<compile_context>
chip_gen: v7x
topology: tpu7x:2x2x1
jax: 0.10.0
libtpu: 0.0.40
codegen_flags: <defaults>
</compile_context>

<pallas_src>
import jax
import jax.numpy as jnp
from jax.experimental import pallas as pl
from jax.experimental.pallas import tpu as pltpu


# Tile caps: 256 rows x 1024 timesteps x 4 B = 1 MiB per buffer; with the input
# and output each double-buffered that is ~4 MiB of VMEM -> comfortably inside
# the scoped defaults on v5e (16 MiB), v6e (32 MiB) and v7x (32 MiB / 64 MiB phys).
_TM_MAX = 256    # rows per tile (multiple of 8)
_TL_MAX = 1024   # timesteps per tile (multiple of 128 -> lane-dense stores)


def _chomp1d_copy_kernel(x_ref, o_ref):
    # x_ref / o_ref: (TM, TL) VMEM tiles of the (rows, time) view.
    # Pure prefix copy: the grid only spans [0, l_out) on the time axis, so the
    # chomped tail is never DMA'd; partial edge tiles are masked by Pallas.
    o_ref[...] = x_ref[...]


def _round_up(x: int, m: int) -> int:
    return ((x + m - 1) // m) * m


def chomp1d(x: jax.Array, chomp_size: int) -> jax.Array:
    """Pallas equivalent of Chomp1d(chomp_size).forward(x) for x of shape (N, C, L)."""
    n, c, l = x.shape
    assert 0 <= chomp_size < l, "chomp_size must be in [0, L)"
    if chomp_size == 0:
        # Nothing to chomp -> identity. (In TCN usage chomp_size = (k-1)*dilation
        # and chomp_size == 0 means "keep everything".)
        return x
    l_out = l - chomp_size

    # Collapse batch & channel into one row axis: fewer grid steps, larger DMAs,
    # and tiling decoupled from N and C so the same kernel scales to real shapes.
    rows = n * c
    x2d = x.reshape(rows, l)

    # Row tile: full extent for small inputs (always a legal block shape),
    # otherwise a multiple-of-8 block; last row block may be partial.
    tm = rows if rows <= _TM_MAX else _TM_MAX
    # Lane tile: multiple of 128 so stores are unmasked except (at most) the final
    # lane block of l_out.
    tl = min(_TL_MAX, _round_up(l_out, 128))

    grid = (pl.cdiv(rows, tm), pl.cdiv(l_out, tl))

    out2d = pl.pallas_call(
        _chomp1d_copy_kernel,
        out_shape=jax.ShapeDtypeStruct((rows, l_out), x.dtype),
        grid_spec=pltpu.PrefetchScalarGridSpec(
            num_scalar_prefetch=0,
            grid=grid,
            in_specs=[pl.BlockSpec((tm, tl), lambda i, j: (i, j))],
            out_specs=pl.BlockSpec((tm, tl), lambda i, j: (i, j)),
        ),
        compiler_params=pltpu.CompilerParams(
            # Row blocks and lane blocks are independent -> shard across both
            # TensorCores on v7x; harmless (1 TC) on v5e/v6e.
            dimension_semantics=("parallel", "parallel"),
            # Explicit VMEM budget: ~4 MiB actually used, generous headroom,
            # and below physical VMEM on every generation.
            vmem_limit_bytes=32 * 1024 * 1024,
        ),
    )(x2d)

    # TODO(synk): for production, fold the chomp into the consumer's BlockSpec /
    # index_map (or do a strided HBM->HBM DMA under pl.ANY) so no copy kernel is
    # materialized at all.
    return out2d.reshape(n, c, l_out)


if __name__ == "__main__":
    key = jax.random.PRNGKey(0)

    # Small TCN-like shape consistent with the module: (N, C, L)
    N, C, L = 2, 4, 16
    chomp_size = 3
    x = jax.random.normal(key, (N, C, L), dtype=jnp.float32)

    y = jax.block_until_ready(chomp1d(x, chomp_size))
    ref = x[:, :, : L - chomp_size]
    assert y.shape == (N, C, L - chomp_size), y.shape
    assert jnp.array_equal(y, ref), "Pallas chomp1d mismatch vs reference slice"

    # Secondary check that exercises multi-block tiling (rows > 256, l_out > 1024)
    # and partial edge tiles on both axes.
    N2, C2, L2, chomp2 = 3, 90, 1500, 123
    x2 = jax.random.normal(jax.random.PRNGKey(1), (N2, C2, L2), dtype=jnp.float32)
    y2 = jax.block_until_ready(chomp1d(x2, chomp2))
    assert jnp.array_equal(y2, x2[:, :, : L2 - chomp2]), "mismatch on tiled path"

    print("KERNEL_OK")
</pallas_src>

<mosaic_0001>
module attributes {stable_mosaic.version = 11 : i64} {
  func.func @_chomp1d_copy_kernel(%arg0: i32, %arg1: i32, %arg2: memref<8x128xf32, #tpu.memory_space<vmem>>, %arg3: memref<8x128xf32, #tpu.memory_space<vmem>>) attributes {dimension_semantics = [#tpu.dimension_semantics<parallel>, #tpu.dimension_semantics<parallel>], iteration_bounds = array<i64: 1, 1>, scalar_prefetch = 0 : i64, scratch_operands = 0 : i64, tpu.core_type = #tpu.core_type<tc>, window_params = [{transform_indices = @transform_0, window_bounds = array<i64: 8, 128>}, {transform_indices = @transform_1, window_bounds = array<i64: 8, 128>}]} {
    %c0 = arith.constant 0 : index
    %c0_0 = arith.constant 0 : index
    %0 = vector.load %arg2[%c0, %c0_0] : memref<8x128xf32, #tpu.memory_space<vmem>>, vector<8x128xf32>
    %c0_1 = arith.constant 0 : index
    %c0_2 = arith.constant 0 : index
    %1 = vector.load %arg3[%c0_1, %c0_2] : memref<8x128xf32, #tpu.memory_space<vmem>>, vector<8x128xf32>
    tpu.vector_store %arg3[%c0_1, %c0_2], %0 {strides = array<i32>} : memref<8x128xf32, #tpu.memory_space<vmem>>, vector<8x128xf32>,
    return
  }
  func.func @transform_0(%arg0: i32, %arg1: i32) -> (i32, i32) {
    %c0_i32 = arith.constant 0 : i32
    return %arg0, %arg1 : i32, i32
  }
  func.func @transform_1(%arg0: i32, %arg1: i32) -> (i32, i32) {
    %c0_i32 = arith.constant 0 : i32
    return %arg0, %arg1 : i32, i32
  }
}

</mosaic_0001>

<llo_original>
// kernel: tpu_custom_call.1
$region0: #{tpu_custom_call.1}
  #allocation0 [shape = 'u32[]', space=smem, size = 0x4, offset = 0x4, fixed_abs, tag = 'smem constant byte address 0x4 - core index']
  #allocation1 [shape = 'u32[144,128]{1,0:T(1,128)}', space=vmem, size = 0x12000, scoped, tag = 'internal scratch']
  %s0 = inlined_call_operand.hbm [shape: f32[8,16], index: 0, kind: input, shape index: {}]
  %s1 = inlined_call_operand.hbm [shape: f32[8,13], index: 1, kind: output, shape index: {}]
  %s2 = sld [smem:[#allocation0]]
  $region18: #{tpu_custom_call.1} parent=0
    _
  %s4 = ssub.s32 1, %s2
  %s5 = scalar_select 0, %s4, %s2
  $region1: #{tpu_custom_call.1} parent=0
    #allocation2 [shape = 'u8[4096]{0}', space=vmem, size = 0x1000, scoped, tag = 'input window, operand 0, single buffered']
    #allocation3 [shape = 's32[1]{0}', space=sflag, size = 0x4, scoped, tag = 'scoped memory for tpu_custom_call.1']
    #allocation4 [shape = 's32[1]{0}', space=sflag, size = 0x4, scoped, tag = 'scoped memory for tpu_custom_call.1']
    #allocation5 [shape = 'u8[4096]{0}', space=vmem, size = 0x1000, scoped, tag = 'output window, operand 0, single buffered']
    %6 = vsyncpa [#allocation3], 0
    %7 = vsyncpa [#allocation4], 0
    // Predicated region
    $region2: #{tpu_custom_call.1} parent=1 // pred_check
      _
    $region3: #{tpu_custom_call.1} parent=1 // pred_check_branch
      %9 = sbr.rel (0) target = $region5
    $region4: #{tpu_custom_call.1} parent=1 // pred_region
      %s11 = ssub.s32 128, 128
      %12 = vsyncadd [#allocation3], %s11
      %s14 = sshll.u32 [#allocation2], 4
      %s15 = int_to_ptr.vmem [resolvable:$true] %s14
      %17 = dma.hbm_to_vmem [thread:$0]  %s0, 128, %s15, [#allocation3]
    $region5: #{tpu_custom_call.1} parent=1 // pred_fallthru
      _
    // Predicated region
    $region6: #{tpu_custom_call.1} parent=1 // pred_check
      _
    $region7: #{tpu_custom_call.1} parent=1 // pred_check_branch
      %19 = sbr.rel (0) target = $region9
    $region8: #{tpu_custom_call.1} parent=1 // pred_region
      %20 = dma.done [#allocation3], 128
    $region9: #{tpu_custom_call.1} parent=1 // pred_fallthru
      _
    %v21 = vld [vmem:[#allocation2] sm:$0xff]
    %22 = vst [vmem:[#allocation5] sm:$0xff] %v21
    // Predicated region
    $region10: #{tpu_custom_call.1} parent=1 // pred_check
      _
    $region11: #{tpu_custom_call.1} parent=1 // pred_check_branch
      %24 = sbr.rel (0) target = $region13
    $region12: #{tpu_custom_call.1} parent=1 // pred_region
      %s26 = ssub.s32 128, 128
      %27 = vsyncadd [#allocation4], %s26
      %s29 = sshll.u32 [#allocation5], 4
      %s30 = int_to_ptr.vmem [resolvable:$true] %s29
      %32 = dma.vmem_to_hbm [thread:$0]  %s30, 128, %s1, [#allocation4]
    $region13: #{tpu_custom_call.1} parent=1 // pred_fallthru
      _
    // Predicated region
    $region14: #{tpu_custom_call.1} parent=1 // pred_check
      _
    $region15: #{tpu_custom_call.1} parent=1 // pred_check_branch
      %34 = sbr.rel (0) target = $region17
    $region16: #{tpu_custom_call.1} parent=1 // pred_region
      %35 = dma.done [#allocation4], 128
    $region17: #{tpu_custom_call.1} parent=1 // pred_fallthru
      _
    %36 = vsyncpa [#allocation3], 1
    %37 = vsyncpa [#allocation4], 1

</llo_original>
